<compile_context>
chip_gen: v7x
topology: tpu7x:2x2x1
jax: 0.10.0
libtpu: 0.0.40
codegen_flags: <defaults>
</compile_context>

<pallas_src>
import math

import jax
import jax.numpy as jnp
from jax.experimental import pallas as pl
from jax.experimental.pallas import tpu as pltpu


def _round_up(x: int, m: int) -> int:
    return ((x + m - 1) // m) * m


def _vmem_capacity_bytes() -> int:
    """Physical per-core VMEM; conservative fallback if the query is unavailable."""
    try:
        return int(pltpu.get_tpu_info().vmem_capacity_bytes)
    except Exception:
        return 64 << 20  # v7x per-TensorCore VMEM (smallest across v5e/v6e/v7x)


def _stage2_working_set_bytes(B_pad: int, P_pad: int, tn: int) -> int:
    resident = 2 * (B_pad * P_pad * 2)       # h (bf16, default-double-buffered const spec)
    resident += 2 * (P_pad * 4)              # b2 (f32 resident)
    streamed = 2 * (P_pad * tn * 2)          # w2 N-tile (bf16, double-buffered)
    streamed += 2 * (B_pad * tn * 4)         # out N-tile (f32, double-buffered)
    return resident + streamed


def _pick_tile_n(P_pad: int, B_pad: int, vmem_budget: int) -> int:
    """Widest lane-dense tile (multiple of 256 preferred, 128 fallback) dividing P_pad
    that fits the VMEM budget; keep >= 2 grid steps when P_pad allows so the next w2
    tile's DMA overlaps the current tile's matmul (and both v7x cores get work)."""
    cands = [c for c in (2048, 1024, 512, 256, 128) if P_pad % c == 0]
    for tn in cands:
        if P_pad // tn >= 2 and _stage2_working_set_bytes(B_pad, P_pad, tn) <= vmem_budget:
            return tn
    for tn in cands:
        if _stage2_working_set_bytes(B_pad, P_pad, tn) <= vmem_budget:
            return tn
    return 128


# ---------------------------------------------------------------------------
# Stage 1: sinusoidal embedding + Linear1 + SiLU  ->  h (bf16)
# ---------------------------------------------------------------------------
def _h_kernel(t_ref, freqs_ref, w1a_ref, w1b_ref, b1_ref, h_ref):
    ang = t_ref[...] * freqs_ref[...]                    # [B_pad,1]*[1,half] -> [B_pad,half] f32
    sin = jnp.sin(ang).astype(jnp.bfloat16)              # bf16 only as MXU operands
    cos = jnp.cos(ang).astype(jnp.bfloat16)
    h = (
        jnp.dot(sin, w1a_ref[...], preferred_element_type=jnp.float32)
        + jnp.dot(cos, w1b_ref[...], preferred_element_type=jnp.float32)
        + b1_ref[...]
    )                                                     # [B_pad, P_pad] f32
    h = h * jax.nn.sigmoid(h)                             # SiLU in f32
    h_ref[...] = h.astype(h_ref.dtype)


# ---------------------------------------------------------------------------
# Stage 2: h @ w2 + b2, one lane-dense N tile per grid step ("parallel" axis)
# ---------------------------------------------------------------------------
def _make_proj_kernel(tn: int):
    def kernel(h_ref, w2_ref, b2_ref, o_ref):
        off = pl.multiple_of(pl.program_id(0) * tn, tn)   # aligned lane offset into resident b2
        y = jnp.dot(h_ref[...], w2_ref[...], preferred_element_type=jnp.float32)
        o_ref[...] = (y + b2_ref[:, pl.ds(off, tn)]).astype(o_ref.dtype)

    return kernel


def timestep_embedding(timesteps, w1, b1, w2, b2, *, embedding_dim, projection_dim,
                       max_positions=10000):
    """timesteps: [B] -> [B, projection_dim] float32.

    Weights are [in_dim, out_dim] (transposed vs. PyTorch nn.Linear.weight), biases
    [out_dim].  Matches emb = concat([sin, cos]) with emb_scale =
    log(max_positions)/(half_dim-1) exactly as in the reference PyTorch forward.
    Matmul operands are bf16 (f32 accumulate) -- matches f32 PyTorch to ~5e-2.
    """
    half_dim = embedding_dim // 2
    assert half_dim >= 2, "embedding_dim must be >= 4 (emb_scale divides by half_dim-1)"
    emb_scale = math.log(max_positions) / (half_dim - 1)

    B = timesteps.shape[0]
    B_pad = _round_up(max(B, 8), 8)
    P = projection_dim
    P_pad = _round_up(P, 128)

    cap = _vmem_capacity_bytes()
    tn = _pick_tile_n(P_pad, B_pad, vmem_budget=cap // 2)
    n_tiles = P_pad // tn
    ws = _stage2_working_set_bytes(B_pad, P_pad, tn)
    vmem_limit = int(min(cap * 7 // 8, max(4 * ws, 32 << 20)))

    # --- host-side layout prep (all lane-dense / padded) ---
    t2d = jnp.zeros((B_pad, 1), jnp.float32).at[:B, 0].set(timesteps.astype(jnp.float32))
    freqs = jnp.exp(jnp.arange(half_dim, dtype=jnp.float32) * (-emb_scale)).reshape(1, half_dim)

    def pad2(x, rows, cols):
        return jnp.pad(x, ((0, rows - x.shape[0]), (0, cols - x.shape[1])))

    w1f = w1.astype(jnp.float32)
    # Split w1 into sin-half / cos-half (no in-kernel concat).  For odd embedding_dim
    # PyTorch appends a zero column to emb, so w1's final row contributes nothing.
    w1a = pad2(w1f[:half_dim, :], half_dim, P_pad).astype(jnp.bfloat16)
    w1b = pad2(w1f[half_dim:2 * half_dim, :], half_dim, P_pad).astype(jnp.bfloat16)
    w2p = pad2(w2.astype(jnp.float32), P_pad, P_pad).astype(jnp.bfloat16)
    b1p = jnp.pad(b1.astype(jnp.float32), (0, P_pad - P)).reshape(1, P_pad)
    b2p = jnp.pad(b2.astype(jnp.float32), (0, P_pad - P)).reshape(1, P_pad)

    # Stage 1: single block, tiny working set (defaults are fine).
    h = pl.pallas_call(
        _h_kernel,
        out_shape=jax.ShapeDtypeStruct((B_pad, P_pad), jnp.bfloat16),
    )(t2d, freqs, w1a, w1b, b1p)

    # Stage 2: stream w2 / out in lane-dense N tiles; h and b2 are resident.
    out = pl.pallas_call(
        _make_proj_kernel(tn),
        out_shape=jax.ShapeDtypeStruct((B_pad, P_pad), jnp.float32),
        grid_spec=pltpu.PrefetchScalarGridSpec(
            num_scalar_prefetch=0,
            grid=(n_tiles,),
            in_specs=[
                pl.BlockSpec((B_pad, P_pad), lambda j: (0, 0)),   # h (resident)
                pl.BlockSpec((P_pad, tn), lambda j: (0, j)),      # w2 N-tile (streamed)
                pl.BlockSpec((1, P_pad), lambda j: (0, 0)),       # b2 (resident, sliced in-kernel)
            ],
            out_specs=pl.BlockSpec((B_pad, tn), lambda j: (0, j)),
        ),
        compiler_params=pltpu.CompilerParams(
            # Output tiles are disjoint and all inputs are read-only -> safe to
            # parallelize across TensorCores (uses both cores on v7x).
            dimension_semantics=("parallel",),
            vmem_limit_bytes=vmem_limit,
        ),
    )(h, w2p, b2p)

    return out[:B, :P]


# ---------------------------------------------------------------------------
# References
# ---------------------------------------------------------------------------
def _reference_f32(timesteps, w1, b1, w2, b2, embedding_dim, max_positions):
    half = embedding_dim // 2
    scale = math.log(max_positions) / (half - 1)
    freqs = jnp.exp(jnp.arange(half, dtype=jnp.float32) * (-scale))
    ang = timesteps.astype(jnp.float32)[:, None] * freqs[None, :]
    emb = jnp.concatenate([jnp.sin(ang), jnp.cos(ang)], axis=1)
    if embedding_dim % 2 == 1:
        emb = jnp.concatenate([emb, jnp.zeros_like(emb[:, :1])], axis=1)
    h = emb @ w1 + b1
    h = h * jax.nn.sigmoid(h)
    return h @ w2 + b2


def _reference_bf16(timesteps, w1, b1, w2, b2, embedding_dim, max_positions):
    # Mirrors the kernel's quantization points (bf16 matmul operands, f32 accumulate).
    half = embedding_dim // 2
    scale = math.log(max_positions) / (half - 1)
    freqs = jnp.exp(jnp.arange(half, dtype=jnp.float32) * (-scale))
    ang = timesteps.astype(jnp.float32)[:, None] * freqs[None, :]
    sin = jnp.sin(ang).astype(jnp.bfloat16).astype(jnp.float32)
    cos = jnp.cos(ang).astype(jnp.bfloat16).astype(jnp.float32)
    w1q = w1.astype(jnp.bfloat16).astype(jnp.float32)
    w2q = w2.astype(jnp.bfloat16).astype(jnp.float32)
    h = sin @ w1q[:half] + cos @ w1q[half:2 * half] + b1
    h = h * jax.nn.sigmoid(h)
    hq = h.astype(jnp.bfloat16).astype(jnp.float32)
    return hq @ w2q + b2


if __name__ == "__main__":
    max_positions = 10000

    def run_case(embedding_dim, projection_dim, B, key):
        k_t, k_w1, k_b1, k_w2, k_b2 = jax.random.split(key, 5)
        # Deterministic synthetic params (PyTorch nn.Linear-style uniform init),
        # stored directly as [in_dim, out_dim].
        bound1 = 1.0 / math.sqrt(embedding_dim)
        bound2 = 1.0 / math.sqrt(projection_dim)
        w1 = jax.random.uniform(k_w1, (embedding_dim, projection_dim),
                                minval=-bound1, maxval=bound1, dtype=jnp.float32)
        b1 = jax.random.uniform(k_b1, (projection_dim,),
                                minval=-bound1, maxval=bound1, dtype=jnp.float32)
        w2 = jax.random.uniform(k_w2, (projection_dim, projection_dim),
                                minval=-bound2, maxval=bound2, dtype=jnp.float32)
        b2 = jax.random.uniform(k_b2, (projection_dim,),
                                minval=-bound2, maxval=bound2, dtype=jnp.float32)
        # Timesteps: integer-valued diffusion steps in [0, 1000)
        timesteps = jax.random.randint(k_t, (B,), 0, 1000).astype(jnp.float32)

        out = timestep_embedding(
            timesteps, w1, b1, w2, b2,
            embedding_dim=embedding_dim,
            projection_dim=projection_dim,
            max_positions=max_positions,
        )
        out = jax.block_until_ready(out)

        ref_q = _reference_bf16(timesteps, w1, b1, w2, b2, embedding_dim, max_positions)
        ref_f = _reference_f32(timesteps, w1, b1, w2, b2, embedding_dim, max_positions)

        assert out.shape == (B, projection_dim)
        # Tight check vs. a reference with the same bf16 quantization points.
        assert jnp.allclose(out, ref_q, atol=2e-3, rtol=2e-3), "mismatch vs bf16-matched reference"
        # Loose sanity check vs. the pure-f32 PyTorch-equivalent math.
        assert jnp.allclose(out, ref_f, atol=5e-2, rtol=5e-2), "mismatch vs f32 reference"

    key = jax.random.PRNGKey(0)
    k1, k2 = jax.random.split(key)
    # Case 1: single-tile path (P_pad = 128, grid = (1,)).
    run_case(embedding_dim=32, projection_dim=32, B=8, key=k1)
    # Case 2: odd embedding_dim + multi-tile streamed w2 (P_pad = 512, tn = 256, 2 tiles,
    # padded batch), exercising the "parallel" grid axis and the in-kernel b2 slice.
    run_case(embedding_dim=33, projection_dim=512, B=5, key=k2)

    print("KERNEL_OK")
</pallas_src>

<mosaic_0001>
module attributes {stable_mosaic.version = 11 : i64} {
  func.func @_h_kernel(%arg0: memref<8x1xf32, #tpu.memory_space<vmem>>, %arg1: memref<1x16xf32, #tpu.memory_space<vmem>>, %arg2: memref<16x128xbf16, #tpu.memory_space<vmem>>, %arg3: memref<16x128xbf16, #tpu.memory_space<vmem>>, %arg4: memref<1x128xf32, #tpu.memory_space<vmem>>, %arg5: memref<8x128xbf16, #tpu.memory_space<vmem>>) attributes {dimension_semantics = [], scalar_prefetch = 0 : i64, scratch_operands = 0 : i64, tpu.core_type = #tpu.core_type<tc>} {
    %c0 = arith.constant 0 : index
    %c0_0 = arith.constant 0 : index
    %0 = vector.load %arg0[%c0, %c0_0] : memref<8x1xf32, #tpu.memory_space<vmem>>, vector<8x1xf32>
    %c0_1 = arith.constant 0 : index
    %c0_2 = arith.constant 0 : index
    %1 = vector.load %arg1[%c0_1, %c0_2] : memref<1x16xf32, #tpu.memory_space<vmem>>, vector<1x16xf32>
    %2 = vector.broadcast %0 : vector<8x1xf32> to vector<8x16xf32>
    %3 = vector.broadcast %1 : vector<1x16xf32> to vector<8x16xf32>
    %4 = arith.mulf %2, %3 : vector<8x16xf32>
    %5 = math.sin %4 : vector<8x16xf32>
    %6 = arith.truncf %5 : vector<8x16xf32> to vector<8x16xbf16>
    %7 = math.cos %4 : vector<8x16xf32>
    %8 = arith.truncf %7 : vector<8x16xf32> to vector<8x16xbf16>
    %c0_3 = arith.constant 0 : index
    %c0_4 = arith.constant 0 : index
    %9 = vector.load %arg2[%c0_3, %c0_4] : memref<16x128xbf16, #tpu.memory_space<vmem>>, vector<16x128xbf16>
    %cst = arith.constant dense<0.000000e+00> : vector<8x128xf32>
    %10 = tpu.matmul %6, %9, %cst {dimension_numbers = #tpu.dot_dimension_numbers<[1], [0], [0], [1], [0, 0, 1, 1], [], []>} : vector<8x16xbf16>, vector<16x128xbf16>, vector<8x128xf32> -> vector<8x128xf32>
    %c0_5 = arith.constant 0 : index
    %c0_6 = arith.constant 0 : index
    %11 = vector.load %arg3[%c0_5, %c0_6] : memref<16x128xbf16, #tpu.memory_space<vmem>>, vector<16x128xbf16>
    %cst_7 = arith.constant dense<0.000000e+00> : vector<8x128xf32>
    %12 = tpu.matmul %8, %11, %cst_7 {dimension_numbers = #tpu.dot_dimension_numbers<[1], [0], [0], [1], [0, 0, 1, 1], [], []>} : vector<8x16xbf16>, vector<16x128xbf16>, vector<8x128xf32> -> vector<8x128xf32>
    %13 = arith.addf %10, %12 : vector<8x128xf32>
    %c0_8 = arith.constant 0 : index
    %c0_9 = arith.constant 0 : index
    %14 = vector.load %arg4[%c0_8, %c0_9] : memref<1x128xf32, #tpu.memory_space<vmem>>, vector<1x128xf32>
    %15 = vector.broadcast %14 : vector<1x128xf32> to vector<8x128xf32>
    %16 = arith.addf %13, %15 : vector<8x128xf32>
    %17 = arith.negf %16 : vector<8x128xf32>
    %18 = math.exp %17 : vector<8x128xf32>
    %cst_10 = arith.constant 1.000000e+00 : f32
    %19 = vector.broadcast %cst_10 : f32 to vector<8x128xf32>
    %20 = arith.addf %19, %18 : vector<8x128xf32>
    %21 = arith.divf %19, %20 : vector<8x128xf32>
    %22 = arith.mulf %16, %21 : vector<8x128xf32>
    %23 = arith.truncf %22 : vector<8x128xf32> to vector<8x128xbf16>
    %c0_11 = arith.constant 0 : index
    %c0_12 = arith.constant 0 : index
    %24 = vector.load %arg5[%c0_11, %c0_12] : memref<8x128xbf16, #tpu.memory_space<vmem>>, vector<8x128xbf16>
    tpu.vector_store %arg5[%c0_11, %c0_12], %23 {strides = array<i32>} : memref<8x128xbf16, #tpu.memory_space<vmem>>, vector<8x128xbf16>,
    return
  }
}

</mosaic_0001>

<llo_original>
// kernel: tpu_custom_call.1
$region0: #{tpu_custom_call.1}
  #allocation0 [shape = 'u32[]', space=smem, size = 0x4, offset = 0x4, fixed_abs, tag = 'smem constant byte address 0x4 - core index']
  #allocation1 [shape = 'u32[144,128]{1,0:T(1,128)}', space=vmem, size = 0x12000, scoped, tag = 'internal scratch']
  %s0 = inlined_call_operand.vmem [shape: f32[8,1], index: 0, kind: input, shape index: {}]
  %s1 = inlined_call_operand.hbm [shape: f32[1,16], index: 1, kind: input, shape index: {}]
  %s2 = inlined_call_operand.vmem [shape: bf16[16,128], index: 2, kind: input, shape index: {}]
  %s3 = inlined_call_operand.vmem [shape: bf16[16,128], index: 3, kind: input, shape index: {}]
  %s4 = inlined_call_operand.vmem [shape: f32[1,128], index: 4, kind: input, shape index: {}]
  %s5 = inlined_call_operand.hbm [shape: bf16[8,128], index: 5, kind: output, shape index: {}]
  %s6 = sld [smem:[#allocation0]]
  $region34: #{tpu_custom_call.1} parent=0
    _
  %s8 = ssub.s32 1, %s6
  %s9 = scalar_select 0, %s8, %s6
  $region1: #{tpu_custom_call.1} parent=0
    #allocation2 [shape = 'u8[512]{0}', space=vmem, size = 0x400, scoped, tag = 'input window, operand 1, single buffered']
    #allocation3 [shape = 's32[1]{0}', space=sflag, size = 0x4, scoped, tag = 'scoped memory for tpu_custom_call.1']
    #allocation4 [shape = 's32[1]{0}', space=sflag, size = 0x4, scoped, tag = 'scoped memory for tpu_custom_call.1']
    #allocation5 [shape = 'u8[2048]{0}', space=vmem, size = 0x800, scoped, tag = 'output window, operand 0, single buffered']
    %10 = vsyncpa [#allocation3], 0
    %11 = vsyncpa [#allocation4], 0
    // Predicated region
    $region2: #{tpu_custom_call.1} parent=1 // pred_check
      _
    $region3: #{tpu_custom_call.1} parent=1 // pred_check_branch
      %13 = sbr.rel (0) target = $region5
    $region4: #{tpu_custom_call.1} parent=1 // pred_region
      _
    $region5: #{tpu_custom_call.1} parent=1 // pred_fallthru
      _
    // Predicated region
    $region6: #{tpu_custom_call.1} parent=1 // pred_check
      _
    $region7: #{tpu_custom_call.1} parent=1 // pred_check_branch
      %15 = sbr.rel (0) target = $region9
    $region8: #{tpu_custom_call.1} parent=1 // pred_region
      %s17 = ssub.s32 16, 16
      %18 = vsyncadd [#allocation3], %s17
      %s20 = sshll.u32 [#allocation2], 4
      %s21 = int_to_ptr.vmem [resolvable:$true] %s20
      %23 = dma.hbm_to_vmem [thread:$0]  %s1, 16, %s21, [#allocation3]
    $region9: #{tpu_custom_call.1} parent=1 // pred_fallthru
      _
    // Predicated region
    $region10: #{tpu_custom_call.1} parent=1 // pred_check
      _
    $region11: #{tpu_custom_call.1} parent=1 // pred_check_branch
      %25 = sbr.rel (0) target = $region13
    $region12: #{tpu_custom_call.1} parent=1 // pred_region
      _
    $region13: #{tpu_custom_call.1} parent=1 // pred_fallthru
      _
    // Predicated region
    $region14: #{tpu_custom_call.1} parent=1 // pred_check
      _
    $region15: #{tpu_custom_call.1} parent=1 // pred_check_branch
      %27 = sbr.rel (0) target = $region17
    $region16: #{tpu_custom_call.1} parent=1 // pred_region
      _
    $region17: #{tpu_custom_call.1} parent=1 // pred_fallthru
      _
    // Predicated region
    $region18: #{tpu_custom_call.1} parent=1 // pred_check
      _
    $region19: #{tpu_custom_call.1} parent=1 // pred_check_branch
      %29 = sbr.rel (0) target = $region21
    $region20: #{tpu_custom_call.1} parent=1 // pred_region
      _
    $region21: #{tpu_custom_call.1} parent=1 // pred_fallthru
      _
    // Predicated region
    $region22: #{tpu_custom_call.1} parent=1 // pred_check
      _
    $region23: #{tpu_custom_call.1} parent=1 // pred_check_branch
      %31 = sbr.rel (0) target = $region25
    $region24: #{tpu_custom_call.1} parent=1 // pred_region
      %32 = dma.done [#allocation3], 16
    $region25: #{tpu_custom_call.1} parent=1 // pred_fallthru
      _
    %v34 = vld [vmem:[%s0] sm:$0xff]
    %v35 = vld [vmem:[#allocation2] sm:$0x1]
    %37 = vset.pattern.permute.xlu0 0
    %38 = vperm.xlu0 %37, %v34
    %v39 = vpop.permute.xlu0 %38
    %v42 = vlaneseq
    %v43 = vshrl.u32 %v42, 7
    %v44 = vsub.s32 0, %v43
    %v45 = vrot.slane %v35, %v44
    %v47 = vmul.f32 %v39, %v45
    %v48 = vand.u32 2147483647, %v47
    %vm49 = vcmp.le.f32.partialorder %v48, 0.7853982
    %vm50 = vcmp.lt.s32.totalorder %v47, 0
    %v51 = vand.u32 %v47, 2139095040
    %v52 = vshrl.u32 %v51, 23
    %v53 = vsub.s32 %v52, 127
    %v54 = vand.u32 2147483647, %v47
    %v55 = vand.u32 %v54, 8388607
    %v56 = vor.u32 %v55, 8388608
    %v57 = vsub.s32 0, %v56
    %v58 = vadd.s32 %v53, 1
    %vm59 = vcmp.gt.s32.totalorder %v58, 0
    %v60 = vsel %vm59, %v58, 0
    %v61 = vshrl.u32 %v60, 5
    %v62 = vand.u32 %v60, 31
    %v63 = vsub.s32 32, %v62
    %v64 = vshrl.u32 683565275, %v63
    %v65 = vshll.u32 683565275, %v62
    %v66 = vshrl.u32 2475754826, %v63
    %v67 = vor.u32 %v65, %v66
    %v68 = vshll.u32 2475754826, %v62
    %v69 = vshrl.u32 2131351028, %v63
    %v70 = vor.u32 %v68, %v69
    %v71 = vshll.u32 2131351028, %v62
    %v72 = vshrl.u32 2102212464, %v63
    %v73 = vor.u32 %v71, %v72
    %v74 = vshll.u32 2102212464, %v62
    %v75 = vshrl.u32 920167782, %v63
    %v76 = vor.u32 %v74, %v75
    %v77 = vshll.u32 920167782, %v62
    %v78 = vshrl.u32 1326507024, %v63
    %v79 = vor.u32 %v77, %v78
    %vm80 = vcmp.lt.s32.totalorder %v61, 1
    %vm81 = vcmp.lt.s32.totalorder %v61, 2
    %vm82 = vcmp.lt.s32.totalorder %v61, 3
    %vm83 = vcmp.lt.s32.totalorder %v61, 4
    %v84 = vsel %vm80, %v64, %v67
    %v85 = vsel %vm83, %v73, 2102212464
    %v86 = vsel %vm82, %v70, %v85
    %v87 = vsel %vm81, %v84, %v86
    %v88 = vsel %vm80, %v67, %v70
    %v89 = vsel %vm83, %v76, 920167782
    %v90 = vsel %vm82, %v73, %v89
    %v91 = vsel %vm81, %v88, %v90
    %v92 = vsel %vm80, %v70, %v73
    %v93 = vsel %vm83, %v79, 1326507024
    %v94 = vsel %vm82, %v76, %v93
    %v95 = vsel %vm81, %v92, %v94
    %v96 = vshll.u32 %v56, 8
    %v97 = vmul.u32.u64.compose %v96, %v95
    %v98 = vextract.low.u32 %v97
    %v99 = vextract.high.u32 %v97
    %v100 = vmul.u32.u64.compose %v96, %v91
    %v101 = vextract.low.u32 %v100
    %v102 = vextract.high.u32 %v100
    %v103 = vmul.u32 %v96, %v87
    %v104 = vadd.s32 %v99, %v101
    %vm105 = vc.u32 %v99, %v101
    %v106 = vadd.s32 %v102, 1
    %v107 = vsel %vm105, %v106, %v102
    %v108 = vadd.s32 %v103, %v107
    %v109 = vadd.s32 %v108, 536870912
    %v110 = vshrl.u32 %v109, 30
    %v111 = vshll.u32 %v110, 30
    %v112 = vsub.s32 %v108, %v111
    %vm113 = vcmp.lt.s32.totalorder %v112, 0
    %v114 = vsub.s32 0, %v112
    %v115 = vsel %vm113, %v114, %v112
    %v116 = vclz %v115
    %v117 = vsub.s32 %v116, 2
    %vm118 = vcmp.gt.s32.totalorder 0, %v117
    %v119 = vsel %vm118, 0, %v117
    %v120 = vsub.s32 32, %v119
    %v121 = vshll.u32 %v112, %v119
    %v122 = vshrl.u32 %v104, %v120
    %v123 = vor.u32 %v121, %v122
    %v124 = vsub.s32 4294967266, %v119
    %v125 = vadd.s32 %v124, 127
    %v126 = vshll.u32 %v125, 23
    %v127 = vor.u32 4788187, %v126
    %v128 = vand.u32 2147483647, %v127
    %v130 = vcvt.s32.f32 %v123
    %v131 = vmul.f32 %v130, %v128
    %v132 = vxor.u32 %v131, 2147483648
    %v133 = vsel %vm50, %v132, %v131
    %v134 = vsub.s32 4, %v110
    %v135 = vsel %vm50, %v134, %v110
    %v136 = vsel %vm49, %v47, %v133
    %v137 = vsel %vm49, 0, %v135
    %v138 = vcosq.f32.pop %v136
    %v139 = vsinq.f32.pop %v136
    %vm140 = vweird.f32 %v47
    %v141 = vadd.s32 %v137, 3
    %v142 = vand.u32 %v141, 3
    %vm143 = vcmp.lt.s32.totalorder %v142, 2
    %vm144 = vcmp.eq.s32.totalorder %v142, 0
    %v145 = vxor.u32 %v139, 2147483648
    %v146 = vsel %vm144, %v138, %v145
    %vm147 = vcmp.eq.s32.totalorder %v142, 2
    %v148 = vxor.u32 %v138, 2147483648
    %v149 = vsel %vm147, %v148, %v139
    %v150 = vsel %vm143, %v146, %v149
    %v151 = vsel %vm140, nan, %v150
    %v152 = vpack.c.bf16 %v151, %v151
    %v153 = vand.u32 2147483647, %v47
    %vm154 = vcmp.le.f32.partialorder %v153, 0.7853982
    %vm155 = vcmp.lt.s32.totalorder %v47, 0
    %v156 = vand.u32 %v47, 2139095040
    %v157 = vshrl.u32 %v156, 23
    %v158 = vsub.s32 %v157, 127
    %v159 = vand.u32 2147483647, %v47
    %v160 = vand.u32 %v159, 8388607
    %v161 = vor.u32 %v160, 8388608
    %v162 = vsub.s32 0, %v161
    %v163 = vadd.s32 %v158, 1
    %vm164 = vcmp.gt.s32.totalorder %v163, 0
    %v165 = vsel %vm164, %v163, 0
    %v166 = vshrl.u32 %v165, 5
    %v167 = vand.u32 %v165, 31
    %v168 = vsub.s32 32, %v167
    %v169 = vshrl.u32 683565275, %v168
    %v170 = vshll.u32 683565275, %v167
    %v171 = vshrl.u32 2475754826, %v168
    %v172 = vor.u32 %v170, %v171
    %v173 = vshll.u32 2475754826, %v167
    %v174 = vshrl.u32 2131351028, %v168
    %v175 = vor.u32 %v173, %v174
    %v176 = vshll.u32 2131351028, %v167
    %v177 = vshrl.u32 2102212464, %v168
    %v178 = vor.u32 %v176, %v177
    %v179 = vshll.u32 2102212464, %v167
    %v180 = vshrl.u32 920167782, %v168
    %v181 = vor.u32 %v179, %v180
    %v182 = vshll.u32 920167782, %v167
    %v183 = vshrl.u32 1326507024, %v168
    %v184 = vor.u32 %v182, %v183
    %vm185 = vcmp.lt.s32.totalorder %v166, 1
    %vm186 = vcmp.lt.s32.totalorder %v166, 2
    %vm187 = vcmp.lt.s32.totalorder %v166, 3
    %vm188 = vcmp.lt.s32.totalorder %v166, 4
    %v189 = vsel %vm185, %v169, %v172
    %v190 = vsel %vm188, %v178, 2102212464
    %v191 = vsel %vm187, %v175, %v190
    %v192 = vsel %vm186, %v189, %v191
    %v193 = vsel %vm185, %v172, %v175
    %v194 = vsel %vm188, %v181, 920167782
    %v195 = vsel %vm187, %v178, %v194
    %v196 = vsel %vm186, %v193, %v195
    %v197 = vsel %vm185, %v175, %v178
    %v198 = vsel %vm188, %v184, 1326507024
    %v199 = vsel %vm187, %v181, %v198
    %v200 = vsel %vm186, %v197, %v199
    %v201 = vshll.u32 %v161, 8
    %v202 = vmul.u32.u64.compose %v201, %v200
    %v203 = vextract.low.u32 %v202
    %v204 = vextract.high.u32 %v202
    %v205 = vmul.u32.u64.compose %v201, %v196
    %v206 = vextract.low.u32 %v205
    %v207 = vextract.high.u32 %v205
    %v208 = vmul.u32 %v201, %v192
    %v209 = vadd.s32 %v204, %v206
    %vm210 = vc.u32 %v204, %v206
    %v211 = vadd.s32 %v207, 1
    %v212 = vsel %vm210, %v211, %v207
    %v213 = vadd.s32 %v208, %v212
    %v214 = vadd.s32 %v213, 536870912
    %v215 = vshrl.u32 %v214, 30
    %v216 = vshll.u32 %v215, 30
    %v217 = vsub.s32 %v213, %v216
    %vm218 = vcmp.lt.s32.totalorder %v217, 0
    %v219 = vsub.s32 0, %v217
    %v220 = vsel %vm218, %v219, %v217
    %v221 = vclz %v220
    %v222 = vsub.s32 %v221, 2
    %vm223 = vcmp.gt.s32.totalorder 0, %v222
    %v224 = vsel %vm223, 0, %v222
    %v225 = vsub.s32 32, %v224
    %v226 = vshll.u32 %v217, %v224
    %v227 = vshrl.u32 %v209, %v225
    %v228 = vor.u32 %v226, %v227
    %v229 = vsub.s32 4294967266, %v224
    %v230 = vadd.s32 %v229, 127
    %v231 = vshll.u32 %v230, 23
    %v232 = vor.u32 4788187, %v231
    %v233 = vand.u32 2147483647, %v232
    %v235 = vcvt.s32.f32 %v228
    %v236 = vmul.f32 %v235, %v233
    %v237 = vxor.u32 %v236, 2147483648
    %v238 = vsel %vm155, %v237, %v236
    %v239 = vsub.s32 4, %v215
    %v240 = vsel %vm155, %v239, %v215
    %v241 = vsel %vm154, %v47, %v238
    %v242 = vsel %vm154, 0, %v240
    %v243 = vcosq.f32.pop %v241
    %v244 = vsinq.f32.pop %v241
    %vm245 = vweird.f32 %v47
    %v246 = vand.u32 %v242, 3
    %vm247 = vcmp.lt.s32.totalorder %v246, 2
    %vm248 = vcmp.eq.s32.totalorder %v246, 0
    %v249 = vxor.u32 %v244, 2147483648
    %v250 = vsel %vm248, %v243, %v249
    %vm251 = vcmp.eq.s32.totalorder %v246, 2
    %v252 = vxor.u32 %v243, 2147483648
    %v253 = vsel %vm251, %v252, %v244
    %v254 = vsel %vm247, %v250, %v253
    %v255 = vsel %vm245, nan, %v254
    %v256 = vpack.c.bf16 %v255, %v255
    %v257 = vld [vmem:[%s2] sm:$0xf]
    %v258 = vld [vmem:[%s2 + $0x4] sm:$0xf]
    %v259 = vld [vmem:[%s3] sm:$0xf]
    %v260 = vld [vmem:[%s3 + $0x4] sm:$0xf]
    %v263 = vunpack.c.l.b16 %v259
    %v264 = vunpack.c.l.b16 %v260
    %v265 = vpack.c.b16 %v264, %v263
    %vm267 = vcmask 130048
    %v269 = vsel %vm267, %v256, 0
    %271 = vmatprep.subr.bf16.mxu0 0
    %272 = vmatpush1.bf16.msra.mxu0 %v265
    %273 = vmatprep.subr.bf16.mxu0 0
    %274 = vmatpush1.bf16.msra.mxu0 0
    %275 = vmatprep.subr.bf16.mxu0 0
    %276 = vmatpush1.bf16.msra.mxu0 0
    %277 = vmatprep.subr.bf16.mxu0 0
    %278 = vmatpush1.bf16.msra.mxu0 0
    %279 = vmatprep.subr.bf16.mxu0 0
    %280 = vmatpush1.bf16.msra.mxu0 0
    %281 = vmatprep.subr.bf16.mxu0 0
    %282 = vmatpush1.bf16.msra.mxu0 0
    %283 = vmatprep.subr.bf16.mxu0 0
    %284 = vmatpush1.bf16.msra.mxu0 0
    %285 = vmatprep.subr.bf16.mxu0 0
    %286 = vmatpush1.bf16.msra.mxu0 0
    %287 = vmatprep.subr.bf16.mxu0 0
    %288 = vmatpush1.bf16.msra.mxu0 0
    %289 = vmatprep.subr.bf16.mxu0 0
    %290 = vmatpush1.bf16.msra.mxu0 0
    %291 = vmatprep.subr.bf16.mxu0 0
    %292 = vmatpush1.bf16.msra.mxu0 0
    %293 = vmatprep.subr.bf16.mxu0 0
    %294 = vmatpush1.bf16.msra.mxu0 0
    %295 = vmatprep.subr.bf16.mxu0 0
    %296 = vmatpush1.bf16.msra.mxu0 0
    %297 = vmatprep.subr.bf16.mxu0 0
    %298 = vmatpush1.bf16.msra.mxu0 0
    %299 = vmatprep.subr.bf16.mxu0 0
    %300 = vmatpush1.bf16.msra.mxu0 0
    %301 = vmatprep.subr.bf16.mxu0 0
    %302 = vmatpush1.bf16.msra.mxu0 0
    %303 = vmatprep.mubr.bf16.mxu0 0
    %304 = vmatmul.mubr.bf16.gmra.mrb[0].mxu0 %v269
    %v305 = vpop.f32.mrb[0].mxu0
    %v306 = vadd.f32 0.0, %v305
    %v307 = vpop.f32.mrb[0].mxu0
    %v308 = vpop.f32.mrb[0].mxu0
    %v309 = vpop.f32.mrb[0].mxu0
    %310 = vdwg.mxu0
    %v313 = vunpack.c.l.b16 %v257
    %v314 = vunpack.c.l.b16 %v258
    %v315 = vpack.c.b16 %v314, %v313
    %v318 = vsel %vm267, %v152, 0
    %320 = vmatprep.subr.bf16.mxu0 0
    %321 = vmatpush1.bf16.msra.mxu0 %v315
    %322 = vmatprep.subr.bf16.mxu0 0
    %323 = vmatpush1.bf16.msra.mxu0 0
    %324 = vmatprep.subr.bf16.mxu0 0
    %325 = vmatpush1.bf16.msra.mxu0 0
    %326 = vmatprep.subr.bf16.mxu0 0
    %327 = vmatpush1.bf16.msra.mxu0 0
    %328 = vmatprep.subr.bf16.mxu0 0
    %329 = vmatpush1.bf16.msra.mxu0 0
    %330 = vmatprep.subr.bf16.mxu0 0
    %331 = vmatpush1.bf16.msra.mxu0 0
    %332 = vmatprep.subr.bf16.mxu0 0
    %333 = vmatpush1.bf16.msra.mxu0 0
    %334 = vmatprep.subr.bf16.mxu0 0
    %335 = vmatpush1.bf16.msra.mxu0 0
    %336 = vmatprep.subr.bf16.mxu0 0
    %337 = vmatpush1.bf16.msra.mxu0 0
    %338 = vmatprep.subr.bf16.mxu0 0
    %339 = vmatpush1.bf16.msra.mxu0 0
    %340 = vmatprep.subr.bf16.mxu0 0
    %341 = vmatpush1.bf16.msra.mxu0 0
    %342 = vmatprep.subr.bf16.mxu0 0
    %343 = vmatpush1.bf16.msra.mxu0 0
    %344 = vmatprep.subr.bf16.mxu0 0
    %345 = vmatpush1.bf16.msra.mxu0 0
    %346 = vmatprep.subr.bf16.mxu0 0
    %347 = vmatpush1.bf16.msra.mxu0 0
    %348 = vmatprep.subr.bf16.mxu0 0
    %349 = vmatpush1.bf16.msra.mxu0 0
    %350 = vmatprep.subr.bf16.mxu0 0
    %351 = vmatpush1.bf16.msra.mxu0 0
    %352 = vmatprep.mubr.bf16.mxu0 0
    %353 = vmatmul.mubr.bf16.gmra.mrb[0].mxu0 %v318
    %v354 = vpop.f32.mrb[0].mxu0
    %v355 = vadd.f32 %v306, %v354
    %v356 = vpop.f32.mrb[0].mxu0
    %v357 = vpop.f32.mrb[0].mxu0
    %v358 = vpop.f32.mrb[0].mxu0
    %359 = vdwg.mxu0
    %v360 = vld [vmem:[%s4] sm:$0x1]
    %v362 = vlaneseq
    %v363 = vshrl.u32 %v362, 7
    %v364 = vsub.s32 0, %v363
    %v365 = vrot.slane %v360, %v364
    %v367 = vadd.f32 %v355, %v365
    %v368 = vxor.u32 %v367, 2147483648
    %v369 = vmul.f32 %v368, 1.442695
    %v370 = vpow.pop %v369
    %v371 = vadd.f32 %v370, 1.0
    %v372 = vrcp.pop %v371
    %v373 = vmul.f32 1.0, %v372
    %v374 = vmul.f32 %v367, %v373
    %v375 = vpack.c.bf16 %v374, %v374
    %376 = vst [vmem:[#allocation5] sm:$0xf] %v375
    // Predicated region
    $region26: #{tpu_custom_call.1} parent=1 // pred_check
      _
    $region27: #{tpu_custom_call.1} parent=1 // pred_check_branch
      %378 = sbr.rel (0) target = $region29
    $region28: #{tpu_custom_call.1} parent=1 // pred_region
      %s380 = ssub.s32 64, 64
      %381 = vsyncadd [#allocation4], %s380
      %s383 = sshll.u32 [#allocation5], 4
      %s384 = int_to_ptr.vmem [resolvable:$true] %s383
      %386 = dma.vmem_to_hbm [thread:$0]  %s384, 64, %s5, [#allocation4]
    $region29: #{tpu_custom_call.1} parent=1 // pred_fallthru
      _
    // Predicated region
    $region30: #{tpu_custom_call.1} parent=1 // pred_check
      _
    $region31: #{tpu_custom_call.1} parent=1 // pred_check_branch
      %388 = sbr.rel (0) target = $region33
    $region32: #{tpu_custom_call.1} parent=1 // pred_region
      %389 = dma.done [#allocation4], 64
    $region33: #{tpu_custom_call.1} parent=1 // pred_fallthru
      _
    %390 = vsyncpa [#allocation3], 1
    %391 = vsyncpa [#allocation4], 1

</llo_original>
